<compile_context>
chip_gen: v6e
topology: v6e:2x2x1
jax: 0.10.0
libtpu: 0.0.40
codegen_flags: <defaults>
</compile_context>

<pallas_src>
import jax
import jax.numpy as jnp
from jax.experimental import pallas as pl
from jax.experimental.pallas import tpu as pltpu


def _nf_kernel(w_ref, s_ref, b_ref, wdot_ref, z_ref, zk_ref, logj_ref):
    """One grid step == one batch tile through ALL flows.

    w_ref    : [L, D]   flow weights (resident, constant index_map)
    s_ref    : [L, D]   flow scales
    b_ref    : [L, 1]   flow biases
    wdot_ref : [L, 1]   per-flow scalar  w . s  (precomputed in the wrapper)
    z_ref    : [TB, D]  input z0 tile
    zk_ref   : [TB, D]  final z tile
    logj_ref : [TB, L]  per-flow log|det J| for this tile (flows on the lane axis)
    """
    num_flows = w_ref.shape[0]

    z = z_ref[...].astype(jnp.float32)            # [TB, D]
    logdet_cols = []

    # Static Python loop over flows: fully unrolled, all slices are static.
    for l in range(num_flows):
        w = w_ref[l:l + 1, :]                     # [1, D]
        s = s_ref[l:l + 1, :]                     # [1, D]
        b = b_ref[l:l + 1, :]                     # [1, 1]
        wd = wdot_ref[l:l + 1, :]                 # [1, 1]  (= w . s)

        # activation = z @ w^T + b  -> mul + lane reduce (no N=1 MXU matmul)
        act = jnp.sum(z * w, axis=-1, keepdims=True) + b       # [TB, 1]
        t = jnp.tanh(act)                                       # [TB, 1]

        # det = 1 + psi @ s^T = 1 + (1 - t^2) * (w . s)   (algebraically identical)
        det = 1.0 + (1.0 - t * t) * wd                           # [TB, 1]
        logdet_cols.append(jnp.log(jnp.abs(det) + 1e-7))         # safe_log

        # PlanarFlow transform (applied AFTER the log-det of this flow)
        z = z + s * t                                            # [TB, D]

    zk_ref[...] = z.astype(zk_ref.dtype)
    logj_ref[...] = jnp.concatenate(logdet_cols, axis=-1).astype(logj_ref.dtype)


def normalizing_flow(z, weights, biases, scales, *, block_b=512):
    """z: [B, D]; weights/scales: [L, D]; biases: [L].
    Returns (zk [B, D], list of L log-jacobians each [B, 1])."""
    B, D = z.shape
    L = weights.shape[0]

    w = weights.astype(jnp.float32).reshape(L, D)
    s = scales.astype(jnp.float32).reshape(L, D)
    b = biases.astype(jnp.float32).reshape(L, 1)
    wdot = jnp.sum(w * s, axis=-1, keepdims=True)                # [L, 1]

    # Batch tiling: rows are independent -> "parallel" grid axis.
    if B > block_b:
        TB = block_b                                             # multiple of 8
        n_tiles = pl.cdiv(B, TB)
        Bp = n_tiles * TB
        z_in = jnp.pad(z, ((0, Bp - B), (0, 0)))
    else:
        TB, n_tiles, Bp, z_in = B, 1, B, z

    zk, logj = pl.pallas_call(
        _nf_kernel,
        out_shape=(
            jax.ShapeDtypeStruct((Bp, D), z.dtype),
            jax.ShapeDtypeStruct((Bp, L), jnp.float32),
        ),
        grid=(n_tiles,),
        in_specs=[
            pl.BlockSpec((L, D), lambda i: (0, 0)),              # weights (resident)
            pl.BlockSpec((L, D), lambda i: (0, 0)),              # scales  (resident)
            pl.BlockSpec((L, 1), lambda i: (0, 0)),              # biases  (resident)
            pl.BlockSpec((L, 1), lambda i: (0, 0)),              # w.s     (resident)
            pl.BlockSpec((TB, D), lambda i: (i, 0)),             # z0 tile
        ],
        out_specs=(
            pl.BlockSpec((TB, D), lambda i: (i, 0)),             # zk tile
            pl.BlockSpec((TB, L), lambda i: (i, 0)),             # log|det J| slab
        ),
        compiler_params=pltpu.CompilerParams(
            dimension_semantics=("parallel",),                   # batch tiles independent
        ),
    )(w, s, b, wdot, z_in)

    zk = zk[:B]
    logj = logj[:B]
    log_jacobians = [logj[:, i:i + 1] for i in range(L)]         # each [B, 1]
    return zk, log_jacobians


def _reference(z, weights, biases, scales):
    """Pure-JAX reference mirroring the PyTorch forward."""
    log_jacs = []
    L = weights.shape[0]
    for i in range(L):
        w = weights[i:i + 1]          # [1, D]
        s = scales[i:i + 1]           # [1, D]
        b = biases[i]                 # scalar
        act = z @ w.T + b             # [B, 1]
        t = jnp.tanh(act)
        psi = (1.0 - t * t) * w
        det = 1.0 + psi @ s.T
        log_jacs.append(jnp.log(jnp.abs(det) + 1e-7))
        z = z + s * t
    return z, log_jacs


if __name__ == "__main__":
    B, D, L = 2, 32, 4   # batch=2, dim=32, flow_length=4

    key = jax.random.PRNGKey(0)
    kz, kw, kb, ks = jax.random.split(key, 4)

    z0 = jax.random.normal(kz, (B, D), dtype=jnp.float32)
    # PlanarFlow.reset_parameters: uniform(-0.01, 0.01)
    weights = jax.random.uniform(kw, (L, D), minval=-0.01, maxval=0.01, dtype=jnp.float32)
    biases = jax.random.uniform(kb, (L,), minval=-0.01, maxval=0.01, dtype=jnp.float32)
    scales = jax.random.uniform(ks, (L, D), minval=-0.01, maxval=0.01, dtype=jnp.float32)

    zk, log_jacs = normalizing_flow(z0, weights, biases, scales)
    zk = jax.block_until_ready(zk)
    log_jacs = [jax.block_until_ready(lj) for lj in log_jacs]

    zk_ref, log_jacs_ref = _reference(z0, weights, biases, scales)
    assert zk.shape == (B, D)
    assert jnp.allclose(zk, zk_ref, atol=1e-5, rtol=1e-5)
    for a, r in zip(log_jacs, log_jacs_ref):
        assert a.shape == (B, 1)
        assert jnp.allclose(a, r, atol=1e-5, rtol=1e-5)

    print("KERNEL_OK")
</pallas_src>

<mosaic_0001>
module attributes {stable_mosaic.version = 11 : i64} {
  func.func @_nf_kernel(%arg0: i32, %arg1: memref<4x32xf32, #tpu.memory_space<vmem>>, %arg2: memref<4x32xf32, #tpu.memory_space<vmem>>, %arg3: memref<4x1xf32, #tpu.memory_space<vmem>>, %arg4: memref<4x1xf32, #tpu.memory_space<vmem>>, %arg5: memref<2x32xf32, #tpu.memory_space<vmem>>, %arg6: memref<2x32xf32, #tpu.memory_space<vmem>>, %arg7: memref<2x4xf32, #tpu.memory_space<vmem>>) attributes {dimension_semantics = [#tpu.dimension_semantics<parallel>], iteration_bounds = array<i64: 1>, scalar_prefetch = 0 : i64, scratch_operands = 0 : i64, tpu.core_type = #tpu.core_type<tc>, window_params = [{pipeline_mode = #tpu.pipeline_mode<synchronous>, transform_indices = @transform_0, window_bounds = array<i64: 4, 32>}, {pipeline_mode = #tpu.pipeline_mode<synchronous>, transform_indices = @transform_1, window_bounds = array<i64: 4, 32>}, {pipeline_mode = #tpu.pipeline_mode<synchronous>, transform_indices = @transform_2, window_bounds = array<i64: 4, 1>}, {pipeline_mode = #tpu.pipeline_mode<synchronous>, transform_indices = @transform_3, window_bounds = array<i64: 4, 1>}, {transform_indices = @transform_4, window_bounds = array<i64: 2, 32>}, {transform_indices = @transform_5, window_bounds = array<i64: 2, 32>}, {transform_indices = @transform_6, window_bounds = array<i64: 2, 4>}]} {
    %c0 = arith.constant 0 : index
    %c0_0 = arith.constant 0 : index
    %0 = vector.load %arg5[%c0, %c0_0] : memref<2x32xf32, #tpu.memory_space<vmem>>, vector<2x32xf32>
    %c0_1 = arith.constant 0 : index
    %c0_2 = arith.constant 0 : index
    %1 = vector.load %arg1[%c0_1, %c0_2] : memref<4x32xf32, #tpu.memory_space<vmem>>, vector<1x32xf32>
    %c0_3 = arith.constant 0 : index
    %c0_4 = arith.constant 0 : index
    %2 = vector.load %arg2[%c0_3, %c0_4] : memref<4x32xf32, #tpu.memory_space<vmem>>, vector<1x32xf32>
    %c0_5 = arith.constant 0 : index
    %c0_6 = arith.constant 0 : index
    %3 = vector.load %arg3[%c0_5, %c0_6] : memref<4x1xf32, #tpu.memory_space<vmem>>, vector<1x1xf32>
    %c0_7 = arith.constant 0 : index
    %c0_8 = arith.constant 0 : index
    %4 = vector.load %arg4[%c0_7, %c0_8] : memref<4x1xf32, #tpu.memory_space<vmem>>, vector<1x1xf32>
    %5 = vector.broadcast %1 : vector<1x32xf32> to vector<2x32xf32>
    %6 = arith.mulf %0, %5 : vector<2x32xf32>
    %cst = arith.constant dense<0.000000e+00> : vector<2xf32>
    %7 = vector.multi_reduction <add>, %6, %cst [1] : vector<2x32xf32> to vector<2xf32>
    %8 = vector.shape_cast %7 : vector<2xf32> to vector<2x1xf32>
    %9 = vector.broadcast %3 : vector<1x1xf32> to vector<2x1xf32>
    %10 = arith.addf %8, %9 : vector<2x1xf32>
    %11 = math.tanh %10 : vector<2x1xf32>
    %12 = arith.mulf %11, %11 : vector<2x1xf32>
    %cst_9 = arith.constant 1.000000e+00 : f32
    %13 = vector.broadcast %cst_9 : f32 to vector<2x1xf32>
    %14 = arith.subf %13, %12 : vector<2x1xf32>
    %15 = vector.broadcast %4 : vector<1x1xf32> to vector<2x1xf32>
    %16 = arith.mulf %14, %15 : vector<2x1xf32>
    %cst_10 = arith.constant 1.000000e+00 : f32
    %17 = vector.broadcast %cst_10 : f32 to vector<2x1xf32>
    %18 = arith.addf %17, %16 : vector<2x1xf32>
    %19 = math.absf %18 : vector<2x1xf32>
    %cst_11 = arith.constant 1.000000e-07 : f32
    %20 = vector.broadcast %cst_11 : f32 to vector<2x1xf32>
    %21 = arith.addf %19, %20 : vector<2x1xf32>
    %22 = math.log %21 : vector<2x1xf32>
    %23 = vector.broadcast %2 : vector<1x32xf32> to vector<2x32xf32>
    %24 = vector.broadcast %11 : vector<2x1xf32> to vector<2x32xf32>
    %25 = arith.mulf %23, %24 : vector<2x32xf32>
    %26 = arith.addf %0, %25 : vector<2x32xf32>
    %c1 = arith.constant 1 : index
    %c0_12 = arith.constant 0 : index
    %27 = vector.load %arg1[%c1, %c0_12] : memref<4x32xf32, #tpu.memory_space<vmem>>, vector<1x32xf32>
    %c1_13 = arith.constant 1 : index
    %c0_14 = arith.constant 0 : index
    %28 = vector.load %arg2[%c1_13, %c0_14] : memref<4x32xf32, #tpu.memory_space<vmem>>, vector<1x32xf32>
    %c1_15 = arith.constant 1 : index
    %c0_16 = arith.constant 0 : index
    %29 = vector.load %arg3[%c1_15, %c0_16] : memref<4x1xf32, #tpu.memory_space<vmem>>, vector<1x1xf32>
    %c1_17 = arith.constant 1 : index
    %c0_18 = arith.constant 0 : index
    %30 = vector.load %arg4[%c1_17, %c0_18] : memref<4x1xf32, #tpu.memory_space<vmem>>, vector<1x1xf32>
    %31 = vector.broadcast %27 : vector<1x32xf32> to vector<2x32xf32>
    %32 = arith.mulf %26, %31 : vector<2x32xf32>
    %cst_19 = arith.constant dense<0.000000e+00> : vector<2xf32>
    %33 = vector.multi_reduction <add>, %32, %cst_19 [1] : vector<2x32xf32> to vector<2xf32>
    %34 = vector.shape_cast %33 : vector<2xf32> to vector<2x1xf32>
    %35 = vector.broadcast %29 : vector<1x1xf32> to vector<2x1xf32>
    %36 = arith.addf %34, %35 : vector<2x1xf32>
    %37 = math.tanh %36 : vector<2x1xf32>
    %38 = arith.mulf %37, %37 : vector<2x1xf32>
    %cst_20 = arith.constant 1.000000e+00 : f32
    %39 = vector.broadcast %cst_20 : f32 to vector<2x1xf32>
    %40 = arith.subf %39, %38 : vector<2x1xf32>
    %41 = vector.broadcast %30 : vector<1x1xf32> to vector<2x1xf32>
    %42 = arith.mulf %40, %41 : vector<2x1xf32>
    %cst_21 = arith.constant 1.000000e+00 : f32
    %43 = vector.broadcast %cst_21 : f32 to vector<2x1xf32>
    %44 = arith.addf %43, %42 : vector<2x1xf32>
    %45 = math.absf %44 : vector<2x1xf32>
    %cst_22 = arith.constant 1.000000e-07 : f32
    %46 = vector.broadcast %cst_22 : f32 to vector<2x1xf32>
    %47 = arith.addf %45, %46 : vector<2x1xf32>
    %48 = math.log %47 : vector<2x1xf32>
    %49 = vector.broadcast %28 : vector<1x32xf32> to vector<2x32xf32>
    %50 = vector.broadcast %37 : vector<2x1xf32> to vector<2x32xf32>
    %51 = arith.mulf %49, %50 : vector<2x32xf32>
    %52 = arith.addf %26, %51 : vector<2x32xf32>
    %c2 = arith.constant 2 : index
    %c0_23 = arith.constant 0 : index
    %53 = vector.load %arg1[%c2, %c0_23] : memref<4x32xf32, #tpu.memory_space<vmem>>, vector<1x32xf32>
    %c2_24 = arith.constant 2 : index
    %c0_25 = arith.constant 0 : index
    %54 = vector.load %arg2[%c2_24, %c0_25] : memref<4x32xf32, #tpu.memory_space<vmem>>, vector<1x32xf32>
    %c2_26 = arith.constant 2 : index
    %c0_27 = arith.constant 0 : index
    %55 = vector.load %arg3[%c2_26, %c0_27] : memref<4x1xf32, #tpu.memory_space<vmem>>, vector<1x1xf32>
    %c2_28 = arith.constant 2 : index
    %c0_29 = arith.constant 0 : index
    %56 = vector.load %arg4[%c2_28, %c0_29] : memref<4x1xf32, #tpu.memory_space<vmem>>, vector<1x1xf32>
    %57 = vector.broadcast %53 : vector<1x32xf32> to vector<2x32xf32>
    %58 = arith.mulf %52, %57 : vector<2x32xf32>
    %cst_30 = arith.constant dense<0.000000e+00> : vector<2xf32>
    %59 = vector.multi_reduction <add>, %58, %cst_30 [1] : vector<2x32xf32> to vector<2xf32>
    %60 = vector.shape_cast %59 : vector<2xf32> to vector<2x1xf32>
    %61 = vector.broadcast %55 : vector<1x1xf32> to vector<2x1xf32>
    %62 = arith.addf %60, %61 : vector<2x1xf32>
    %63 = math.tanh %62 : vector<2x1xf32>
    %64 = arith.mulf %63, %63 : vector<2x1xf32>
    %cst_31 = arith.constant 1.000000e+00 : f32
    %65 = vector.broadcast %cst_31 : f32 to vector<2x1xf32>
    %66 = arith.subf %65, %64 : vector<2x1xf32>
    %67 = vector.broadcast %56 : vector<1x1xf32> to vector<2x1xf32>
    %68 = arith.mulf %66, %67 : vector<2x1xf32>
    %cst_32 = arith.constant 1.000000e+00 : f32
    %69 = vector.broadcast %cst_32 : f32 to vector<2x1xf32>
    %70 = arith.addf %69, %68 : vector<2x1xf32>
    %71 = math.absf %70 : vector<2x1xf32>
    %cst_33 = arith.constant 1.000000e-07 : f32
    %72 = vector.broadcast %cst_33 : f32 to vector<2x1xf32>
    %73 = arith.addf %71, %72 : vector<2x1xf32>
    %74 = math.log %73 : vector<2x1xf32>
    %75 = vector.broadcast %54 : vector<1x32xf32> to vector<2x32xf32>
    %76 = vector.broadcast %63 : vector<2x1xf32> to vector<2x32xf32>
    %77 = arith.mulf %75, %76 : vector<2x32xf32>
    %78 = arith.addf %52, %77 : vector<2x32xf32>
    %c3 = arith.constant 3 : index
    %c0_34 = arith.constant 0 : index
    %79 = vector.load %arg1[%c3, %c0_34] : memref<4x32xf32, #tpu.memory_space<vmem>>, vector<1x32xf32>
    %c3_35 = arith.constant 3 : index
    %c0_36 = arith.constant 0 : index
    %80 = vector.load %arg2[%c3_35, %c0_36] : memref<4x32xf32, #tpu.memory_space<vmem>>, vector<1x32xf32>
    %c3_37 = arith.constant 3 : index
    %c0_38 = arith.constant 0 : index
    %81 = vector.load %arg3[%c3_37, %c0_38] : memref<4x1xf32, #tpu.memory_space<vmem>>, vector<1x1xf32>
    %c3_39 = arith.constant 3 : index
    %c0_40 = arith.constant 0 : index
    %82 = vector.load %arg4[%c3_39, %c0_40] : memref<4x1xf32, #tpu.memory_space<vmem>>, vector<1x1xf32>
    %83 = vector.broadcast %79 : vector<1x32xf32> to vector<2x32xf32>
    %84 = arith.mulf %78, %83 : vector<2x32xf32>
    %cst_41 = arith.constant dense<0.000000e+00> : vector<2xf32>
    %85 = vector.multi_reduction <add>, %84, %cst_41 [1] : vector<2x32xf32> to vector<2xf32>
    %86 = vector.shape_cast %85 : vector<2xf32> to vector<2x1xf32>
    %87 = vector.broadcast %81 : vector<1x1xf32> to vector<2x1xf32>
    %88 = arith.addf %86, %87 : vector<2x1xf32>
    %89 = math.tanh %88 : vector<2x1xf32>
    %90 = arith.mulf %89, %89 : vector<2x1xf32>
    %cst_42 = arith.constant 1.000000e+00 : f32
    %91 = vector.broadcast %cst_42 : f32 to vector<2x1xf32>
    %92 = arith.subf %91, %90 : vector<2x1xf32>
    %93 = vector.broadcast %82 : vector<1x1xf32> to vector<2x1xf32>
    %94 = arith.mulf %92, %93 : vector<2x1xf32>
    %cst_43 = arith.constant 1.000000e+00 : f32
    %95 = vector.broadcast %cst_43 : f32 to vector<2x1xf32>
    %96 = arith.addf %95, %94 : vector<2x1xf32>
    %97 = math.absf %96 : vector<2x1xf32>
    %cst_44 = arith.constant 1.000000e-07 : f32
    %98 = vector.broadcast %cst_44 : f32 to vector<2x1xf32>
    %99 = arith.addf %97, %98 : vector<2x1xf32>
    %100 = math.log %99 : vector<2x1xf32>
    %101 = vector.broadcast %80 : vector<1x32xf32> to vector<2x32xf32>
    %102 = vector.broadcast %89 : vector<2x1xf32> to vector<2x32xf32>
    %103 = arith.mulf %101, %102 : vector<2x32xf32>
    %104 = arith.addf %78, %103 : vector<2x32xf32>
    %c0_45 = arith.constant 0 : index
    %c0_46 = arith.constant 0 : index
    %105 = vector.load %arg6[%c0_45, %c0_46] : memref<2x32xf32, #tpu.memory_space<vmem>>, vector<2x32xf32>
    tpu.vector_store %arg6[%c0_45, %c0_46], %104 {strides = array<i32>} : memref<2x32xf32, #tpu.memory_space<vmem>>, vector<2x32xf32>,
    %106 = tpu.concatenate %22, %48, %74, %100 in 1 : vector<2x1xf32>, vector<2x1xf32>, vector<2x1xf32>, vector<2x1xf32> -> vector<2x4xf32>
    %c0_47 = arith.constant 0 : index
    %c0_48 = arith.constant 0 : index
    %107 = vector.load %arg7[%c0_47, %c0_48] : memref<2x4xf32, #tpu.memory_space<vmem>>, vector<2x4xf32>
    tpu.vector_store %arg7[%c0_47, %c0_48], %106 {strides = array<i32>} : memref<2x4xf32, #tpu.memory_space<vmem>>, vector<2x4xf32>,
    return
  }
  func.func @transform_0(%arg0: i32) -> (i32, i32) {
    %c0_i32 = arith.constant 0 : i32
    %c0_i32_0 = arith.constant 0 : i32
    %c0_i32_1 = arith.constant 0 : i32
    return %c0_i32, %c0_i32_0 : i32, i32
  }
  func.func @transform_1(%arg0: i32) -> (i32, i32) {
    %c0_i32 = arith.constant 0 : i32
    %c0_i32_0 = arith.constant 0 : i32
    %c0_i32_1 = arith.constant 0 : i32
    return %c0_i32, %c0_i32_0 : i32, i32
  }
  func.func @transform_2(%arg0: i32) -> (i32, i32) {
    %c0_i32 = arith.constant 0 : i32
    %c0_i32_0 = arith.constant 0 : i32
    %c0_i32_1 = arith.constant 0 : i32
    return %c0_i32, %c0_i32_0 : i32, i32
  }
  func.func @transform_3(%arg0: i32) -> (i32, i32) {
    %c0_i32 = arith.constant 0 : i32
    %c0_i32_0 = arith.constant 0 : i32
    %c0_i32_1 = arith.constant 0 : i32
    return %c0_i32, %c0_i32_0 : i32, i32
  }
  func.func @transform_4(%arg0: i32) -> (i32, i32) {
    %c0_i32 = arith.constant 0 : i32
    %c0_i32_0 = arith.constant 0 : i32
    return %arg0, %c0_i32 : i32, i32
  }
  func.func @transform_5(%arg0: i32) -> (i32, i32) {
    %c0_i32 = arith.constant 0 : i32
    %c0_i32_0 = arith.constant 0 : i32
    return %arg0, %c0_i32 : i32, i32
  }
  func.func @transform_6(%arg0: i32) -> (i32, i32) {
    %c0_i32 = arith.constant 0 : i32
    %c0_i32_0 = arith.constant 0 : i32
    return %arg0, %c0_i32 : i32, i32
  }
}

</mosaic_0001>

<llo_original>
// kernel: tpu_custom_call.1
$region0: #{tpu_custom_call.1}
  #allocation0 [shape = 'u32[]', space=smem, size = 0x4, offset = 0x4, fixed_abs, tag = 'smem constant byte address 0x4 - core index']
  #allocation1 [shape = 'u32[144,128]{1,0:T(1,128)}', space=vmem, size = 0x12000, scoped, tag = 'internal scratch']
  %s0 = inlined_call_operand.vmem [shape: f32[4,32], index: 0, kind: input, shape index: {}]
  %s1 = inlined_call_operand.vmem [shape: f32[4,32], index: 1, kind: input, shape index: {}]
  %s2 = inlined_call_operand.vmem [shape: f32[4,1], index: 2, kind: input, shape index: {}]
  %s3 = inlined_call_operand.vmem [shape: f32[4,1], index: 3, kind: input, shape index: {}]
  %s4 = inlined_call_operand.vmem [shape: f32[2,32], index: 4, kind: input, shape index: {}]
  %s5 = inlined_call_operand.hbm [shape: f32[2,32], index: 5, kind: output, shape index: {0}]
  %s6 = inlined_call_operand.hbm [shape: f32[2,4], index: 6, kind: output, shape index: {1}]
  %7 = xla_tuple %s5, %s6
  %s8 = sld [smem:[#allocation0]]
  $region38: #{tpu_custom_call.1} parent=0
    _
  %s10 = ssub.s32 1, %s8
  %s11 = scalar_select 0, %s10, %s8
  $region1: #{tpu_custom_call.1} parent=0
    #allocation2 [shape = 'u8[1024]{0}', space=vmem, size = 0x400, scoped, tag = 'output window, operand 0, single buffered']
    #allocation3 [shape = 's32[1]{0}', space=sflag, size = 0x4, scoped, tag = 'scoped memory for tpu_custom_call.1']
    #allocation4 [shape = 'u8[1024]{0}', space=vmem, size = 0x400, scoped, tag = 'output window, operand 1, single buffered']
    #allocation5 [shape = 's32[1]{0}', space=sflag, size = 0x4, scoped, tag = 'scoped memory for tpu_custom_call.1']
    %12 = vsyncpa [#allocation3], 0
    %13 = vsyncpa [#allocation5], 0
    // Predicated region
    $region2: #{tpu_custom_call.1} parent=1 // pred_check
      _
    $region3: #{tpu_custom_call.1} parent=1 // pred_check_branch
      %15 = sbr.rel (0) target = $region5
    $region4: #{tpu_custom_call.1} parent=1 // pred_region
      _
    $region5: #{tpu_custom_call.1} parent=1 // pred_fallthru
      _
    // Predicated region
    $region6: #{tpu_custom_call.1} parent=1 // pred_check
      _
    $region7: #{tpu_custom_call.1} parent=1 // pred_check_branch
      %17 = sbr.rel (0) target = $region9
    $region8: #{tpu_custom_call.1} parent=1 // pred_region
      _
    $region9: #{tpu_custom_call.1} parent=1 // pred_fallthru
      _
    // Predicated region
    $region10: #{tpu_custom_call.1} parent=1 // pred_check
      _
    $region11: #{tpu_custom_call.1} parent=1 // pred_check_branch
      %19 = sbr.rel (0) target = $region13
    $region12: #{tpu_custom_call.1} parent=1 // pred_region
      _
    $region13: #{tpu_custom_call.1} parent=1 // pred_fallthru
      _
    // Predicated region
    $region14: #{tpu_custom_call.1} parent=1 // pred_check
      _
    $region15: #{tpu_custom_call.1} parent=1 // pred_check_branch
      %21 = sbr.rel (0) target = $region17
    $region16: #{tpu_custom_call.1} parent=1 // pred_region
      _
    $region17: #{tpu_custom_call.1} parent=1 // pred_fallthru
      _
    // Predicated region
    $region18: #{tpu_custom_call.1} parent=1 // pred_check
      _
    $region19: #{tpu_custom_call.1} parent=1 // pred_check_branch
      %23 = sbr.rel (0) target = $region21
    $region20: #{tpu_custom_call.1} parent=1 // pred_region
      _
    $region21: #{tpu_custom_call.1} parent=1 // pred_fallthru
      _
    %v24 = vld [vmem:[%s4] sm:$0x3]
    %v25 = vld [vmem:[%s0] sm:$0x1]
    %v26 = vld [vmem:[%s1] sm:$0x1]
    %v27 = vld [vmem:[%s2] sm:$0x1]
    %v28 = vld [vmem:[%s3] sm:$0x1]
    %v29 = vlaneseq
    %v30 = vshrl.u32 %v29, 7
    %v31 = vsub.s32 0, %v30
    %v32 = vrot.slane %v25, %v31
    %v33 = vmul.f32 %v24, %v32
    %vm34 = vcmask 254976
    %v35 = vsel %vm34, %v33, 0.0
    %36 = vadd.xlane.f32.xlu0 %v35
    %v37 = vpop.xlane.xlu0 %36
    %v38 = vlaneseq
    %v39 = vshrl.u32 %v38, 7
    %v40 = vsub.s32 0, %v39
    %v41 = vrot.slane %v27, %v40
    %v42 = vadd.f32 %v37, %v41
    %v43 = vtanh.pop %v42
    %v44 = vmul.f32 %v43, %v43
    %v45 = vsub.f32 1.0, %v44
    %v46 = vlaneseq
    %v47 = vshrl.u32 %v46, 7
    %v48 = vsub.s32 0, %v47
    %v49 = vrot.slane %v28, %v48
    %v50 = vmul.f32 %v45, %v49
    %v51 = vadd.f32 %v50, 1.0
    %v52 = vand.u32 2147483647, %v51
    %v53 = vadd.f32 %v52, 1e-07
    %v54 = vlog2.pop %v53
    %v55 = vmul.f32 %v54, 0.6931472
    %v56 = vlaneseq
    %v57 = vshrl.u32 %v56, 7
    %v58 = vsub.s32 0, %v57
    %v59 = vrot.slane %v26, %v58
    %61 = vset.pattern.permute.xlu0 0
    %62 = vperm.xlu0 %61, %v43
    %v63 = vpop.permute.xlu0 %62
    %v65 = vmul.f32 %v59, %v63
    %v66 = vadd.f32 %v24, %v65
    %v67 = vld [vmem:[%s0 + $0x1] sm:$0x1]
    %v68 = vld [vmem:[%s1 + $0x1] sm:$0x1]
    %v69 = vld [vmem:[%s2 + $0x1] sm:$0x1]
    %v70 = vld [vmem:[%s3 + $0x1] sm:$0x1]
    %v71 = vlaneseq
    %v72 = vshrl.u32 %v71, 7
    %v73 = vsub.s32 0, %v72
    %v74 = vrot.slane %v67, %v73
    %v75 = vmul.f32 %v66, %v74
    %v76 = vsel %vm34, %v75, 0.0
    %77 = vadd.xlane.f32.xlu0 %v76
    %v78 = vpop.xlane.xlu0 %77
    %v79 = vlaneseq
    %v80 = vshrl.u32 %v79, 7
    %v81 = vsub.s32 0, %v80
    %v82 = vrot.slane %v69, %v81
    %v83 = vadd.f32 %v78, %v82
    %v84 = vtanh.pop %v83
    %v85 = vmul.f32 %v84, %v84
    %v86 = vsub.f32 1.0, %v85
    %v87 = vlaneseq
    %v88 = vshrl.u32 %v87, 7
    %v89 = vsub.s32 0, %v88
    %v90 = vrot.slane %v70, %v89
    %v91 = vmul.f32 %v86, %v90
    %v92 = vadd.f32 %v91, 1.0
    %v93 = vand.u32 2147483647, %v92
    %v94 = vadd.f32 %v93, 1e-07
    %v95 = vlog2.pop %v94
    %v96 = vmul.f32 %v95, 0.6931472
    %v97 = vlaneseq
    %v98 = vshrl.u32 %v97, 7
    %v99 = vsub.s32 0, %v98
    %v100 = vrot.slane %v68, %v99
    %102 = vset.pattern.permute.xlu0 0
    %103 = vperm.xlu0 %102, %v84
    %v104 = vpop.permute.xlu0 %103
    %v106 = vmul.f32 %v100, %v104
    %v107 = vadd.f32 %v66, %v106
    %v108 = vld [vmem:[%s0 + $0x2] sm:$0x1]
    %v109 = vld [vmem:[%s1 + $0x2] sm:$0x1]
    %v110 = vld [vmem:[%s2 + $0x2] sm:$0x1]
    %v111 = vld [vmem:[%s3 + $0x2] sm:$0x1]
    %v112 = vlaneseq
    %v113 = vshrl.u32 %v112, 7
    %v114 = vsub.s32 0, %v113
    %v115 = vrot.slane %v108, %v114
    %v116 = vmul.f32 %v107, %v115
    %v117 = vsel %vm34, %v116, 0.0
    %118 = vadd.xlane.f32.xlu0 %v117
    %v119 = vpop.xlane.xlu0 %118
    %v120 = vlaneseq
    %v121 = vshrl.u32 %v120, 7
    %v122 = vsub.s32 0, %v121
    %v123 = vrot.slane %v110, %v122
    %v124 = vadd.f32 %v119, %v123
    %v125 = vtanh.pop %v124
    %v126 = vmul.f32 %v125, %v125
    %v127 = vsub.f32 1.0, %v126
    %v128 = vlaneseq
    %v129 = vshrl.u32 %v128, 7
    %v130 = vsub.s32 0, %v129
    %v131 = vrot.slane %v111, %v130
    %v132 = vmul.f32 %v127, %v131
    %v133 = vadd.f32 %v132, 1.0
    %v134 = vand.u32 2147483647, %v133
    %v135 = vadd.f32 %v134, 1e-07
    %v136 = vlog2.pop %v135
    %v137 = vmul.f32 %v136, 0.6931472
    %v138 = vlaneseq
    %v139 = vshrl.u32 %v138, 7
    %v140 = vsub.s32 0, %v139
    %v141 = vrot.slane %v109, %v140
    %143 = vset.pattern.permute.xlu0 0
    %144 = vperm.xlu0 %143, %v125
    %v145 = vpop.permute.xlu0 %144
    %v147 = vmul.f32 %v141, %v145
    %v148 = vadd.f32 %v107, %v147
    %v149 = vld [vmem:[%s0 + $0x3] sm:$0x1]
    %v150 = vld [vmem:[%s1 + $0x3] sm:$0x1]
    %v151 = vld [vmem:[%s2 + $0x3] sm:$0x1]
    %v152 = vld [vmem:[%s3 + $0x3] sm:$0x1]
    %v153 = vlaneseq
    %v154 = vshrl.u32 %v153, 7
    %v155 = vsub.s32 0, %v154
    %v156 = vrot.slane %v149, %v155
    %v157 = vmul.f32 %v148, %v156
    %v158 = vsel %vm34, %v157, 0.0
    %159 = vadd.xlane.f32.xlu0 %v158
    %v160 = vpop.xlane.xlu0 %159
    %v161 = vlaneseq
    %v162 = vshrl.u32 %v161, 7
    %v163 = vsub.s32 0, %v162
    %v164 = vrot.slane %v151, %v163
    %v165 = vadd.f32 %v160, %v164
    %v166 = vtanh.pop %v165
    %v167 = vmul.f32 %v166, %v166
    %v168 = vsub.f32 1.0, %v167
    %v169 = vlaneseq
    %v170 = vshrl.u32 %v169, 7
    %v171 = vsub.s32 0, %v170
    %v172 = vrot.slane %v152, %v171
    %v173 = vmul.f32 %v168, %v172
    %v174 = vadd.f32 %v173, 1.0
    %v175 = vand.u32 2147483647, %v174
    %v176 = vadd.f32 %v175, 1e-07
    %v177 = vlog2.pop %v176
    %v178 = vmul.f32 %v177, 0.6931472
    %v179 = vlaneseq
    %v180 = vshrl.u32 %v179, 7
    %v181 = vsub.s32 0, %v180
    %v182 = vrot.slane %v150, %v181
    %184 = vset.pattern.permute.xlu0 0
    %185 = vperm.xlu0 %184, %v166
    %v186 = vpop.permute.xlu0 %185
    %v188 = vmul.f32 %v182, %v186
    %v189 = vadd.f32 %v148, %v188
    %190 = vst.msk [vmem:[#allocation2] sm:$0x3] %vm34, %v189
    %192 = vrot.lane.b32.xlu0 %v96, 1
    %v193 = vpop.permute.xlu0 %192
    %196 = vrot.lane.b32.xlu0 %v137, 2
    %v197 = vpop.permute.xlu0 %196
    %200 = vrot.lane.b32.xlu0 %v178, 3
    %v201 = vpop.permute.xlu0 %200
    %vm203 = vcmask 7168
    %v204 = vsel %vm203, %v55, %v193
    %vm205 = vcmask 15360
    %v206 = vsel %vm205, %v204, %v197
    %vm207 = vcmask 23552
    %v208 = vsel %vm207, %v206, %v201
    %vm209 = vcmask 25600
    %210 = vst.msk [vmem:[#allocation4] sm:$0x3] %vm209, %v208
    // Predicated region
    $region22: #{tpu_custom_call.1} parent=1 // pred_check
      _
    $region23: #{tpu_custom_call.1} parent=1 // pred_check_branch
      %212 = sbr.rel (0) target = $region25
    $region24: #{tpu_custom_call.1} parent=1 // pred_region
      %s214 = ssub.s32 32, 32
      %215 = vsyncadd [#allocation3], %s214
      %s217 = sshll.u32 [#allocation2], 4
      %s218 = int_to_ptr.vmem [resolvable:$true] %s217
      %220 = dma.vmem_to_hbm [thread:$0]  %s218, 32, %s5, [#allocation3]
    $region25: #{tpu_custom_call.1} parent=1 // pred_fallthru
      _
    // Predicated region
    $region26: #{tpu_custom_call.1} parent=1 // pred_check
      _
    $region27: #{tpu_custom_call.1} parent=1 // pred_check_branch
      %222 = sbr.rel (0) target = $region29
    $region28: #{tpu_custom_call.1} parent=1 // pred_region
      %s224 = ssub.s32 32, 32
      %225 = vsyncadd [#allocation5], %s224
      %s227 = sshll.u32 [#allocation4], 4
      %s228 = int_to_ptr.vmem [resolvable:$true] %s227
      %230 = dma.vmem_to_hbm [thread:$0]  %s228, 32, %s6, [#allocation5]
    $region29: #{tpu_custom_call.1} parent=1 // pred_fallthru
      _
    // Predicated region
    $region30: #{tpu_custom_call.1} parent=1 // pred_check
      _
    $region31: #{tpu_custom_call.1} parent=1 // pred_check_branch
      %232 = sbr.rel (0) target = $region33
    $region32: #{tpu_custom_call.1} parent=1 // pred_region
      %233 = dma.done [#allocation3], 32
    $region33: #{tpu_custom_call.1} parent=1 // pred_fallthru
      _
    // Predicated region
    $region34: #{tpu_custom_call.1} parent=1 // pred_check
      _
    $region35: #{tpu_custom_call.1} parent=1 // pred_check_branch
      %235 = sbr.rel (0) target = $region37
    $region36: #{tpu_custom_call.1} parent=1 // pred_region
      %236 = dma.done [#allocation5], 32
    $region37: #{tpu_custom_call.1} parent=1 // pred_fallthru
      _
    %237 = vsyncpa [#allocation3], 1
    %238 = vsyncpa [#allocation5], 1

</llo_original>
